<compile_context>
chip_gen: v7x
topology: tpu7x:2x2x1
jax: 0.10.0
libtpu: 0.0.40
codegen_flags: <defaults>
</compile_context>

<pallas_src>
import jax
import jax.numpy as jnp
from jax.experimental import pallas as pl
from jax.experimental.pallas import tpu as pltpu

EXPANSION = 4
BN_EPS = 1e-5


# ---------------------------------------------------------------------------
# Kernel: operates on a lane-dense bf16 (nt, H, W*Cin) tile.
# ---------------------------------------------------------------------------
def bottleneck_kernel(x_ref, w1_ref, s1_ref, b1_ref,
                      w2_ref, s2_ref, b2_ref,
                      w3_ref, s3_ref, b3_ref, out_ref):
    nt, H, WC = x_ref.shape            # WC = W * Cin (lane-dense), bf16
    WP = w1_ref.shape[1]               # W * planes

    # ---- conv1 (1x1) + bn1 + relu : one lane-dense MXU matmul -------------
    x_mat = x_ref[...].reshape(nt * H, WC)                       # bf16
    h1 = jnp.dot(x_mat, w1_ref[...], preferred_element_type=jnp.float32)
    h1 = jnp.maximum(h1 * s1_ref[...] + b1_ref[...], 0.0)        # f32 (nt*H, WP)

    # ---- conv2 (3x3, pad=1) + bn2 + relu -----------------------------------
    # Width taps are folded into the block-banded weight w2_ref; only the
    # three height taps are built here (im2col over dy -> one matmul).
    # Cast to bf16 FIRST so the shifted copies and the (nt*H, 3*WP) im2col
    # temporary are half-width (cuts vld/vst traffic and vreg pressure).
    h1_b = h1.astype(jnp.bfloat16).reshape(nt, H, WP)
    zrow = jnp.zeros((nt, 1, WP), jnp.bfloat16)
    up = jnp.concatenate([zrow, h1_b[:, :H - 1, :]], axis=1)     # row h-1 (zero top)
    down = jnp.concatenate([h1_b[:, 1:, :], zrow], axis=1)       # row h+1 (zero bottom)
    cols = jnp.concatenate([up, h1_b, down], axis=-1)            # (nt, H, 3*WP) bf16
    h2 = jnp.dot(cols.reshape(nt * H, 3 * WP), w2_ref[...],
                 preferred_element_type=jnp.float32)
    h2 = jnp.maximum(h2 * s2_ref[...] + b2_ref[...], 0.0)        # f32 (nt*H, WP)

    # ---- conv3 (1x1) + bn3 + residual + relu (f32 BN / residual) -----------
    h3 = jnp.dot(h2.astype(jnp.bfloat16), w3_ref[...],
                 preferred_element_type=jnp.float32)
    h3 = h3 * s3_ref[...] + b3_ref[...]
    # Re-read the input block for the residual (don't keep an f32 copy of x
    # live across the three matmuls).
    res = x_ref[...].reshape(nt * H, WC).astype(jnp.float32)
    out = jnp.maximum(h3 + res, 0.0)                              # WC == W * 4P
    out_ref[...] = out.reshape(nt, H, WC).astype(out_ref.dtype)   # lane-dense store


# ---------------------------------------------------------------------------
# Tiling / parameter folding helpers.
# ---------------------------------------------------------------------------
def _pick_batch_tile(n, h, target_rows=2048, min_steps=2):
    """Largest batch-tile nt dividing n such that nt*h <= target_rows while the
    grid keeps >= min_steps steps (so both v7x TensorCores get work and the
    BlockSpec pipeline can overlap DMA with compute)."""
    best = 1
    for nt in range(1, n + 1):
        if n % nt == 0 and nt * h <= target_rows and n // nt >= min_steps:
            best = nt
    return best


def _width_fold_params(params, W):
    """Fold the width axis into the lane axis.

    1x1 convs -> block-diagonal matmuls; the 3x3 conv -> block-banded matmul
    (width taps in the band, height taps via im2col in the kernel).  Makes
    every matmul / elementwise op / store lane-dense even for tiny `planes`.
    """
    (w1, s1, b1, w2, s2, b2, w3, s3, b3) = params
    eye = jnp.eye(W, dtype=jnp.float32)
    w1_big = jnp.kron(eye, w1)                       # (W*Cin, W*P)
    w3_big = jnp.kron(eye, w3)                       # (W*P,  W*4P)
    blocks = []
    for dy in range(3):
        # band: contribution of input column w' = w + (dx-1)
        blk = sum(jnp.kron(jnp.eye(W, k=1 - dx, dtype=jnp.float32), w2[dy, dx])
                  for dx in range(3))                 # (W*P, W*P)
        blocks.append(blk)
    w2_big = jnp.concatenate(blocks, axis=0)          # (3*W*P, W*P), dy-major rows

    tile = lambda v: jnp.tile(v.reshape(1, -1), (1, W))   # (1, W*C), f32
    return (w1_big.astype(jnp.bfloat16), tile(s1), tile(b1),
            w2_big.astype(jnp.bfloat16), tile(s2), tile(b2),
            w3_big.astype(jnp.bfloat16), tile(s3), tile(b3))


# ---------------------------------------------------------------------------
# Primary API: bf16, width-folded activations (stack blocks in this layout).
# ---------------------------------------------------------------------------
def bottleneck_folded(x_folded, folded):
    """x_folded: (N, H, W*Cin) bfloat16, Cin == 4*planes.  Returns same shape/dtype.

    A stack of Bottleneck blocks should stay in this layout; only convert
    NCHW <-> folded at the model boundary."""
    N, H, WC = x_folded.shape
    assert H % 8 == 0, "H must be a multiple of 8 for free sublane reshapes"
    nt = _pick_batch_tile(N, H)

    full = lambda a: pl.BlockSpec(a.shape, lambda n: (0,) * a.ndim)

    return pl.pallas_call(
        bottleneck_kernel,
        out_shape=jax.ShapeDtypeStruct((N, H, WC), jnp.bfloat16),
        grid_spec=pltpu.PrefetchScalarGridSpec(
            num_scalar_prefetch=0,
            grid=(N // nt,),
            in_specs=[pl.BlockSpec((nt, H, WC), lambda n: (n, 0, 0))]
                     + [full(a) for a in folded],
            out_specs=pl.BlockSpec((nt, H, WC), lambda n: (n, 0, 0)),
        ),
        compiler_params=pltpu.CompilerParams(
            dimension_semantics=("parallel",),
            # Below v7x's 64 MiB physical VMEM; ample on v5e/v6e (128 MiB).
            vmem_limit_bytes=48 * 1024 * 1024),
    )(x_folded, *folded)


# ---------------------------------------------------------------------------
# PyTorch-contract wrapper: NCHW f32 in / NCHW f32 out (single block).
# ---------------------------------------------------------------------------
def bottleneck_pallas(x_nchw, params):
    N, Cin, H, W = x_nchw.shape
    P = params[0].shape[1]
    assert Cin == EXPANSION * P, "residual add requires Cin == 4*planes (no downsample)"
    # Width-fold is only profitable (and VMEM/FLOP-safe on v7x) for small W/planes.
    assert W <= 64 and P <= 64, "use a channels-last spatially-tiled kernel for larger shapes"

    folded = _width_fold_params(params, W)
    # Layout conversion happens only at the module boundary; a stack of blocks
    # should call bottleneck_folded directly and skip these transposes.
    x_folded = (jnp.transpose(x_nchw, (0, 2, 3, 1))
                .reshape(N, H, W * Cin).astype(jnp.bfloat16))
    out_folded = bottleneck_folded(x_folded, folded)
    out = out_folded.astype(jnp.float32).reshape(N, H, W, Cin)
    return jnp.transpose(out, (0, 3, 1, 2))


# ---------------------------------------------------------------------------
# BN folding, parameter construction, pure-JAX reference.
# ---------------------------------------------------------------------------
def fold_bn(gamma, beta, mean, var):
    scale = gamma / jnp.sqrt(var + BN_EPS)
    bias = beta - mean * scale
    return scale[None, :], bias[None, :]                 # (1, C)


def make_params(key, inplanes, planes):
    P, C4 = planes, planes * EXPANSION
    ks = jax.random.split(key, 6)
    w1 = 0.1 * jax.random.normal(ks[0], (inplanes, P), jnp.float32)
    w2 = 0.1 * jax.random.normal(ks[1], (3, 3, P, P), jnp.float32)   # HWIO
    w3 = 0.1 * jax.random.normal(ks[2], (P, C4), jnp.float32)

    def bn(k, c):
        kg, kb, km, kv = jax.random.split(k, 4)
        gamma = 1.0 + 0.05 * jax.random.normal(kg, (c,), jnp.float32)
        beta = 0.05 * jax.random.normal(kb, (c,), jnp.float32)
        mean = 0.05 * jax.random.normal(km, (c,), jnp.float32)
        var = 1.0 + 0.05 * jax.random.uniform(kv, (c,), jnp.float32)
        return fold_bn(gamma, beta, mean, var)

    s1, b1 = bn(ks[3], P)
    s2, b2 = bn(ks[4], P)
    s3, b3 = bn(ks[5], C4)
    return (w1, s1, b1, w2, s2, b2, w3, s3, b3)


def bottleneck_reference(x_nchw, params):
    """Pure-JAX reference (lax conv) matching the PyTorch module (eval BN)."""
    (w1, s1, b1, w2, s2, b2, w3, s3, b3) = params
    x = jnp.transpose(x_nchw, (0, 2, 3, 1))
    dn = ('NHWC', 'HWIO', 'NHWC')
    conv = lambda h, w, pad: jax.lax.conv_general_dilated(
        h, w, (1, 1), pad, dimension_numbers=dn)

    h = conv(x, w1[None, None], 'VALID')
    h = jnp.maximum(h * s1[0] + b1[0], 0.0)
    h = conv(h, w2, ((1, 1), (1, 1)))
    h = jnp.maximum(h * s2[0] + b2[0], 0.0)
    h = conv(h, w3[None, None], 'VALID')
    h = h * s3[0] + b3[0]
    out = jnp.maximum(h + x, 0.0)
    return jnp.transpose(out, (0, 3, 1, 2))


if __name__ == "__main__":
    key = jax.random.PRNGKey(0)
    k_x, k_p = jax.random.split(key)

    N, planes, H, W = 2, 4, 16, 16
    inplanes = planes * EXPANSION          # 16: residual add works, no downsample

    x = jax.random.normal(k_x, (N, inplanes, H, W), jnp.float32)   # NCHW input
    params = make_params(k_p, inplanes, planes)

    out = jax.block_until_ready(bottleneck_pallas(x, params))

    ref = bottleneck_reference(x, params)
    assert out.shape == (N, inplanes, H, W)
    err = float(jnp.max(jnp.abs(out - ref)))
    # bf16 activations at the kernel boundary + bf16 matmul inputs (f32
    # accumulation / BN / residual) -> ~1e-2 max abs error vs the f32 reference.
    assert jnp.allclose(out, ref, rtol=3e-2, atol=3e-2), f"max err {err}"

    print("KERNEL_OK")
</pallas_src>

<mosaic_0001>
module attributes {stable_mosaic.version = 11 : i64} {
  func.func @bottleneck_kernel(%arg0: i32, %arg1: memref<1x16x256xbf16, #tpu.memory_space<vmem>>, %arg2: memref<256x64xbf16, #tpu.memory_space<vmem>>, %arg3: memref<1x64xf32, #tpu.memory_space<vmem>>, %arg4: memref<1x64xf32, #tpu.memory_space<vmem>>, %arg5: memref<192x64xbf16, #tpu.memory_space<vmem>>, %arg6: memref<1x64xf32, #tpu.memory_space<vmem>>, %arg7: memref<1x64xf32, #tpu.memory_space<vmem>>, %arg8: memref<64x256xbf16, #tpu.memory_space<vmem>>, %arg9: memref<1x256xf32, #tpu.memory_space<vmem>>, %arg10: memref<1x256xf32, #tpu.memory_space<vmem>>, %arg11: memref<1x16x256xbf16, #tpu.memory_space<vmem>>) attributes {dimension_semantics = [#tpu.dimension_semantics<parallel>], iteration_bounds = array<i64: 2>, scalar_prefetch = 0 : i64, scratch_operands = 0 : i64, tpu.core_type = #tpu.core_type<tc>, window_params = [{transform_indices = @transform_0, window_bounds = array<i64: 1, 16, 256>}, {pipeline_mode = #tpu.pipeline_mode<synchronous>, transform_indices = @transform_1, window_bounds = array<i64: 256, 64>}, {pipeline_mode = #tpu.pipeline_mode<synchronous>, transform_indices = @transform_2, window_bounds = array<i64: 1, 64>}, {pipeline_mode = #tpu.pipeline_mode<synchronous>, transform_indices = @transform_3, window_bounds = array<i64: 1, 64>}, {pipeline_mode = #tpu.pipeline_mode<synchronous>, transform_indices = @transform_4, window_bounds = array<i64: 192, 64>}, {pipeline_mode = #tpu.pipeline_mode<synchronous>, transform_indices = @transform_5, window_bounds = array<i64: 1, 64>}, {pipeline_mode = #tpu.pipeline_mode<synchronous>, transform_indices = @transform_6, window_bounds = array<i64: 1, 64>}, {pipeline_mode = #tpu.pipeline_mode<synchronous>, transform_indices = @transform_7, window_bounds = array<i64: 64, 256>}, {pipeline_mode = #tpu.pipeline_mode<synchronous>, transform_indices = @transform_8, window_bounds = array<i64: 1, 256>}, {pipeline_mode = #tpu.pipeline_mode<synchronous>, transform_indices = @transform_9, window_bounds = array<i64: 1, 256>}, {transform_indices = @transform_10, window_bounds = array<i64: 1, 16, 256>}]} {
    %c0 = arith.constant 0 : index
    %c0_0 = arith.constant 0 : index
    %c0_1 = arith.constant 0 : index
    %0 = vector.load %arg1[%c0, %c0_0, %c0_1] : memref<1x16x256xbf16, #tpu.memory_space<vmem>>, vector<1x16x256xbf16>
    %1 = vector.shape_cast %0 : vector<1x16x256xbf16> to vector<16x256xbf16>
    %c0_2 = arith.constant 0 : index
    %c0_3 = arith.constant 0 : index
    %2 = vector.load %arg2[%c0_2, %c0_3] : memref<256x64xbf16, #tpu.memory_space<vmem>>, vector<256x64xbf16>
    %cst = arith.constant dense<0.000000e+00> : vector<16x64xf32>
    %3 = tpu.matmul %1, %2, %cst {dimension_numbers = #tpu.dot_dimension_numbers<[1], [0], [0], [1], [0, 0, 1, 1], [], []>} : vector<16x256xbf16>, vector<256x64xbf16>, vector<16x64xf32> -> vector<16x64xf32>
    %c0_4 = arith.constant 0 : index
    %c0_5 = arith.constant 0 : index
    %4 = vector.load %arg3[%c0_4, %c0_5] : memref<1x64xf32, #tpu.memory_space<vmem>>, vector<1x64xf32>
    %5 = vector.broadcast %4 : vector<1x64xf32> to vector<16x64xf32>
    %6 = arith.mulf %3, %5 : vector<16x64xf32>
    %c0_6 = arith.constant 0 : index
    %c0_7 = arith.constant 0 : index
    %7 = vector.load %arg4[%c0_6, %c0_7] : memref<1x64xf32, #tpu.memory_space<vmem>>, vector<1x64xf32>
    %8 = vector.broadcast %7 : vector<1x64xf32> to vector<16x64xf32>
    %9 = arith.addf %6, %8 : vector<16x64xf32>
    %cst_8 = arith.constant 0.000000e+00 : f32
    %10 = vector.broadcast %cst_8 : f32 to vector<16x64xf32>
    %11 = arith.maximumf %9, %10 : vector<16x64xf32>
    %12 = arith.truncf %11 : vector<16x64xf32> to vector<16x64xbf16>
    %13 = vector.shape_cast %12 : vector<16x64xbf16> to vector<1x16x64xbf16>
    %cst_9 = arith.constant 0.000000e+00 : bf16
    %14 = vector.broadcast %cst_9 : bf16 to vector<1x1x64xbf16>
    %15 = vector.extract_strided_slice %13 {offsets = [0, 0, 0], sizes = [1, 15, 64], strides = [1, 1, 1]} : vector<1x16x64xbf16> to vector<1x15x64xbf16>
    %16 = tpu.concatenate %14, %15 in 1 : vector<1x1x64xbf16>, vector<1x15x64xbf16> -> vector<1x16x64xbf16>
    %17 = vector.extract_strided_slice %13 {offsets = [0, 1, 0], sizes = [1, 15, 64], strides = [1, 1, 1]} : vector<1x16x64xbf16> to vector<1x15x64xbf16>
    %18 = tpu.concatenate %17, %14 in 1 : vector<1x15x64xbf16>, vector<1x1x64xbf16> -> vector<1x16x64xbf16>
    %19 = tpu.concatenate %16, %13, %18 in 2 : vector<1x16x64xbf16>, vector<1x16x64xbf16>, vector<1x16x64xbf16> -> vector<1x16x192xbf16>
    %20 = vector.shape_cast %19 : vector<1x16x192xbf16> to vector<16x192xbf16>
    %c0_10 = arith.constant 0 : index
    %c0_11 = arith.constant 0 : index
    %21 = vector.load %arg5[%c0_10, %c0_11] : memref<192x64xbf16, #tpu.memory_space<vmem>>, vector<192x64xbf16>
    %cst_12 = arith.constant dense<0.000000e+00> : vector<16x64xf32>
    %22 = tpu.matmul %20, %21, %cst_12 {dimension_numbers = #tpu.dot_dimension_numbers<[1], [0], [0], [1], [0, 0, 1, 1], [], []>} : vector<16x192xbf16>, vector<192x64xbf16>, vector<16x64xf32> -> vector<16x64xf32>
    %c0_13 = arith.constant 0 : index
    %c0_14 = arith.constant 0 : index
    %23 = vector.load %arg6[%c0_13, %c0_14] : memref<1x64xf32, #tpu.memory_space<vmem>>, vector<1x64xf32>
    %24 = vector.broadcast %23 : vector<1x64xf32> to vector<16x64xf32>
    %25 = arith.mulf %22, %24 : vector<16x64xf32>
    %c0_15 = arith.constant 0 : index
    %c0_16 = arith.constant 0 : index
    %26 = vector.load %arg7[%c0_15, %c0_16] : memref<1x64xf32, #tpu.memory_space<vmem>>, vector<1x64xf32>
    %27 = vector.broadcast %26 : vector<1x64xf32> to vector<16x64xf32>
    %28 = arith.addf %25, %27 : vector<16x64xf32>
    %cst_17 = arith.constant 0.000000e+00 : f32
    %29 = vector.broadcast %cst_17 : f32 to vector<16x64xf32>
    %30 = arith.maximumf %28, %29 : vector<16x64xf32>
    %31 = arith.truncf %30 : vector<16x64xf32> to vector<16x64xbf16>
    %c0_18 = arith.constant 0 : index
    %c0_19 = arith.constant 0 : index
    %32 = vector.load %arg8[%c0_18, %c0_19] : memref<64x256xbf16, #tpu.memory_space<vmem>>, vector<64x256xbf16>
    %cst_20 = arith.constant dense<0.000000e+00> : vector<16x256xf32>
    %33 = tpu.matmul %31, %32, %cst_20 {dimension_numbers = #tpu.dot_dimension_numbers<[1], [0], [0], [1], [0, 0, 1, 1], [], []>} : vector<16x64xbf16>, vector<64x256xbf16>, vector<16x256xf32> -> vector<16x256xf32>
    %c0_21 = arith.constant 0 : index
    %c0_22 = arith.constant 0 : index
    %34 = vector.load %arg9[%c0_21, %c0_22] : memref<1x256xf32, #tpu.memory_space<vmem>>, vector<1x256xf32>
    %35 = vector.broadcast %34 : vector<1x256xf32> to vector<16x256xf32>
    %36 = arith.mulf %33, %35 : vector<16x256xf32>
    %c0_23 = arith.constant 0 : index
    %c0_24 = arith.constant 0 : index
    %37 = vector.load %arg10[%c0_23, %c0_24] : memref<1x256xf32, #tpu.memory_space<vmem>>, vector<1x256xf32>
    %38 = vector.broadcast %37 : vector<1x256xf32> to vector<16x256xf32>
    %39 = arith.addf %36, %38 : vector<16x256xf32>
    %c0_25 = arith.constant 0 : index
    %c0_26 = arith.constant 0 : index
    %c0_27 = arith.constant 0 : index
    %40 = vector.load %arg1[%c0_25, %c0_26, %c0_27] : memref<1x16x256xbf16, #tpu.memory_space<vmem>>, vector<1x16x256xbf16>
    %41 = vector.shape_cast %40 : vector<1x16x256xbf16> to vector<16x256xbf16>
    %42 = arith.extf %41 : vector<16x256xbf16> to vector<16x256xf32>
    %43 = arith.addf %39, %42 : vector<16x256xf32>
    %cst_28 = arith.constant 0.000000e+00 : f32
    %44 = vector.broadcast %cst_28 : f32 to vector<16x256xf32>
    %45 = arith.maximumf %43, %44 : vector<16x256xf32>
    %46 = vector.shape_cast %45 : vector<16x256xf32> to vector<1x16x256xf32>
    %47 = arith.truncf %46 : vector<1x16x256xf32> to vector<1x16x256xbf16>
    %c0_29 = arith.constant 0 : index
    %c0_30 = arith.constant 0 : index
    %c0_31 = arith.constant 0 : index
    %48 = vector.load %arg11[%c0_29, %c0_30, %c0_31] : memref<1x16x256xbf16, #tpu.memory_space<vmem>>, vector<1x16x256xbf16>
    tpu.vector_store %arg11[%c0_29, %c0_30, %c0_31], %47 {strides = array<i32>} : memref<1x16x256xbf16, #tpu.memory_space<vmem>>, vector<1x16x256xbf16>,
    return
  }
  func.func @transform_0(%arg0: i32) -> (i32, i32, i32) {
    %c0_i32 = arith.constant 0 : i32
    %c0_i32_0 = arith.constant 0 : i32
    %c0_i32_1 = arith.constant 0 : i32
    return %arg0, %c0_i32, %c0_i32_0 : i32, i32, i32
  }
  func.func @transform_1(%arg0: i32) -> (i32, i32) {
    %c0_i32 = arith.constant 0 : i32
    %c0_i32_0 = arith.constant 0 : i32
    %c0_i32_1 = arith.constant 0 : i32
    return %c0_i32, %c0_i32_0 : i32, i32
  }
  func.func @transform_2(%arg0: i32) -> (i32, i32) {
    %c0_i32 = arith.constant 0 : i32
    %c0_i32_0 = arith.constant 0 : i32
    %c0_i32_1 = arith.constant 0 : i32
    return %c0_i32, %c0_i32_0 : i32, i32
  }
  func.func @transform_3(%arg0: i32) -> (i32, i32) {
    %c0_i32 = arith.constant 0 : i32
    %c0_i32_0 = arith.constant 0 : i32
    %c0_i32_1 = arith.constant 0 : i32
    return %c0_i32, %c0_i32_0 : i32, i32
  }
  func.func @transform_4(%arg0: i32) -> (i32, i32) {
    %c0_i32 = arith.constant 0 : i32
    %c0_i32_0 = arith.constant 0 : i32
    %c0_i32_1 = arith.constant 0 : i32
    return %c0_i32, %c0_i32_0 : i32, i32
  }
  func.func @transform_5(%arg0: i32) -> (i32, i32) {
    %c0_i32 = arith.constant 0 : i32
    %c0_i32_0 = arith.constant 0 : i32
    %c0_i32_1 = arith.constant 0 : i32
    return %c0_i32, %c0_i32_0 : i32, i32
  }
  func.func @transform_6(%arg0: i32) -> (i32, i32) {
    %c0_i32 = arith.constant 0 : i32
    %c0_i32_0 = arith.constant 0 : i32
    %c0_i32_1 = arith.constant 0 : i32
    return %c0_i32, %c0_i32_0 : i32, i32
  }
  func.func @transform_7(%arg0: i32) -> (i32, i32) {
    %c0_i32 = arith.constant 0 : i32
    %c0_i32_0 = arith.constant 0 : i32
    %c0_i32_1 = arith.constant 0 : i32
    return %c0_i32, %c0_i32_0 : i32, i32
  }
  func.func @transform_8(%arg0: i32) -> (i32, i32) {
    %c0_i32 = arith.constant 0 : i32
    %c0_i32_0 = arith.constant 0 : i32
    %c0_i32_1 = arith.constant 0 : i32
    return %c0_i32, %c0_i32_0 : i32, i32
  }
  func.func @transform_9(%arg0: i32) -> (i32, i32) {
    %c0_i32 = arith.constant 0 : i32
    %c0_i32_0 = arith.constant 0 : i32
    %c0_i32_1 = arith.constant 0 : i32
    return %c0_i32, %c0_i32_0 : i32, i32
  }
  func.func @transform_10(%arg0: i32) -> (i32, i32, i32) {
    %c0_i32 = arith.constant 0 : i32
    %c0_i32_0 = arith.constant 0 : i32
    %c0_i32_1 = arith.constant 0 : i32
    return %arg0, %c0_i32, %c0_i32_0 : i32, i32, i32
  }
}

</mosaic_0001>

<llo_original>
// kernel: tpu_custom_call.1
$region0: #{tpu_custom_call.1}
  #allocation0 [shape = 'u32[]', space=smem, size = 0x4, offset = 0x4, fixed_abs, tag = 'smem constant byte address 0x4 - core index']
  #allocation1 [shape = 'u32[144,128]{1,0:T(1,128)}', space=vmem, size = 0x12000, scoped, tag = 'internal scratch']
  %s0 = inlined_call_operand.vmem [shape: bf16[2,16,256], index: 0, kind: input, shape index: {}]
  %s1 = inlined_call_operand.vmem [shape: bf16[256,64], index: 1, kind: input, shape index: {}]
  %s2 = inlined_call_operand.vmem [shape: f32[1,64], index: 2, kind: input, shape index: {}]
  %s3 = inlined_call_operand.vmem [shape: f32[1,64], index: 3, kind: input, shape index: {}]
  %s4 = inlined_call_operand.vmem [shape: bf16[192,64], index: 4, kind: input, shape index: {}]
  %s5 = inlined_call_operand.vmem [shape: f32[1,64], index: 5, kind: input, shape index: {}]
  %s6 = inlined_call_operand.vmem [shape: f32[1,64], index: 6, kind: input, shape index: {}]
  %s7 = inlined_call_operand.vmem [shape: bf16[64,256], index: 7, kind: input, shape index: {}]
  %s8 = inlined_call_operand.vmem [shape: f32[1,256], index: 8, kind: input, shape index: {}]
  %s9 = inlined_call_operand.vmem [shape: f32[1,256], index: 9, kind: input, shape index: {}]
  %s10 = inlined_call_operand.hbm [shape: bf16[2,16,256], index: 10, kind: output, shape index: {}]
  %s11 = sld [smem:[#allocation0]]
  $region73: #{tpu_custom_call.1} parent=0
    _
  %s13 = ssub.s32 1, %s11
  %s14 = scalar_select 0, %s13, %s11
  $region1: #{tpu_custom_call.1} parent=0
    #allocation2 [shape = 'u8[16384]{0}', space=vmem, size = 0x4000, scoped, tag = 'output window, operand 0']
    #allocation3 [shape = 's32[2]{0}', space=sflag, size = 0x8, scoped, tag = 'scoped memory for tpu_custom_call.1']
    %15 = vsyncpa [#allocation3], 0
    %s16 = scalar_lea.sflag [#allocation3], 1
    %17 = vsyncpa %s16, 0
    loop: start=0, step=1, limit=4
    $region2: #{tpu_custom_call.1} parent=1 // loop_pre_header
      _
    $region3: #{tpu_custom_call.1} parent=1 // loop_header
      %s19 = sphi 0, %s23
      %p20 = scmp.ge.s32.totalorder %s19, 4
      %s29 = sphi 0, %s31
      %s32 = sphi 0, %s29
      %s33 = sphi 0, %s32
      %s49 = sphi 0, %s33
      %s53 = sphi 0, %s53
      %s55 = sphi 0, %s53
      %s56 = sphi 0, %s55
      %s70 = sphi 0, %s56
      %s74 = sphi 0, %s74
      %s76 = sphi 0, %s74
      %s77 = sphi 0, %s76
      %s91 = sphi 0, %s77
      %s95 = sphi 0, %s95
      %s97 = sphi 0, %s95
      %s98 = sphi 0, %s97
      %s112 = sphi 0, %s98
      %s116 = sphi 0, %s116
      %s118 = sphi 0, %s116
      %s119 = sphi 0, %s118
      %s133 = sphi 0, %s119
      %s137 = sphi 0, %s137
      %s139 = sphi 0, %s137
      %s140 = sphi 0, %s139
      %s154 = sphi 0, %s140
      %s158 = sphi 0, %s158
      %s160 = sphi 0, %s158
      %s161 = sphi 0, %s160
      %s175 = sphi 0, %s161
      %s179 = sphi 0, %s179
      %s181 = sphi 0, %s179
      %s182 = sphi 0, %s181
      %s196 = sphi 0, %s182
      %s200 = sphi 0, %s200
      %s202 = sphi 0, %s200
      %s203 = sphi 0, %s202
      %s217 = sphi 0, %s203
      %s221 = sphi 0, %s221
      %s223 = sphi 0, %s221
      %s224 = sphi 0, %s223
      %s238 = sphi 0, %s224
      %s244 = sphi 0, %s246
      %s247 = sphi 0, %s244
      %s248 = sphi 0, %s247
      %s264 = sphi 0, %s248
    $region4: #{tpu_custom_call.1} parent=1 // loop_header_branch
      %22 = sbr.rel (%p20) target = $region8
    $region5: #{tpu_custom_call.1} parent=1 // loop_body
      %s24 = ssub.s32 %s19, 1
      %s25 = ssub.s32 %s19, 2
      %s26 = sadd.s32 %s19, 1
      %s27 = ssub.s32 %s19, %s26
      %p28 = scmp.eq.s32.totalorder %s27, 0
      %s30 = sadd.s32 %s29, 1
      %s31 = scalar_select %p28, %s29, %s30
      %p34 = pneg %p28
      %p35 = scmp.eq.s32.totalorder %s19, 1
      %p36 = por %p34, %p35
      %p37 = scmp.ne.s32.totalorder %s29, %s32
      %p38 = scmp.eq.s32.totalorder %s19, 0
      %p39 = por %p37, %p38
      %p40 = scmp.ne.s32.totalorder %s29, %s32
      %p41 = scmp.eq.s32.totalorder %s24, 1
      %p42 = por %p40, %p41
      %p43 = scmp.ne.s32.totalorder %s32, %s33
      %p44 = scmp.eq.s32.totalorder %s24, 0
      %p45 = por %p43, %p44
      %p46 = scmp.ne.s32.totalorder %s32, %s33
      %p47 = scmp.eq.s32.totalorder %s25, 1
      %p48 = por %p46, %p47
      %p50 = scmp.ne.s32.totalorder %s33, %s49
      %p51 = scmp.eq.s32.totalorder %s25, 0
      %p52 = por %p50, %p51
      %s54 = sadd.s32 %s53, 1
      %p57 = scmp.eq.s32.totalorder %s19, 1
      %p58 = scmp.ne.s32.totalorder %s53, %s55
      %p59 = scmp.eq.s32.totalorder %s19, 0
      %p60 = por %p58, %p59
      %p61 = scmp.ne.s32.totalorder %s53, %s55
      %p62 = scmp.eq.s32.totalorder %s24, 1
      %p63 = por %p61, %p62
      %p64 = scmp.ne.s32.totalorder %s55, %s56
      %p65 = scmp.eq.s32.totalorder %s24, 0
      %p66 = por %p64, %p65
      %p67 = scmp.ne.s32.totalorder %s55, %s56
      %p68 = scmp.eq.s32.totalorder %s25, 1
      %p69 = por %p67, %p68
      %p71 = scmp.ne.s32.totalorder %s56, %s70
      %p72 = scmp.eq.s32.totalorder %s25, 0
      %p73 = por %p71, %p72
      %s75 = sadd.s32 %s74, 1
      %p78 = scmp.eq.s32.totalorder %s19, 1
      %p79 = scmp.ne.s32.totalorder %s74, %s76
      %p80 = scmp.eq.s32.totalorder %s19, 0
      %p81 = por %p79, %p80
      %p82 = scmp.ne.s32.totalorder %s74, %s76
      %p83 = scmp.eq.s32.totalorder %s24, 1
      %p84 = por %p82, %p83
      %p85 = scmp.ne.s32.totalorder %s76, %s77
      %p86 = scmp.eq.s32.totalorder %s24, 0
      %p87 = por %p85, %p86
      %p88 = scmp.ne.s32.totalorder %s76, %s77
      %p89 = scmp.eq.s32.totalorder %s25, 1
      %p90 = por %p88, %p89
      %p92 = scmp.ne.s32.totalorder %s77, %s91
      %p93 = scmp.eq.s32.totalorder %s25, 0
      %p94 = por %p92, %p93
      %s96 = sadd.s32 %s95, 1
      %p99 = scmp.eq.s32.totalorder %s19, 1
      %p100 = scmp.ne.s32.totalorder %s95, %s97
      %p101 = scmp.eq.s32.totalorder %s19, 0
      %p102 = por %p100, %p101
      %p103 = scmp.ne.s32.totalorder %s95, %s97
      %p104 = scmp.eq.s32.totalorder %s24, 1
      %p105 = por %p103, %p104
      %p106 = scmp.ne.s32.totalorder %s97, %s98
      %p107 = scmp.eq.s32.totalorder %s24, 0
      %p108 = por %p106, %p107
      %p109 = scmp.ne.s32.totalorder %s97, %s98
      %p110 = scmp.eq.s32.totalorder %s25, 1
      %p111 = por %p109, %p110
      %p113 = scmp.ne.s32.totalorder %s98, %s112
      %p114 = scmp.eq.s32.totalorder %s25, 0
      %p115 = por %p113, %p114
      %s117 = sadd.s32 %s116, 1
      %p120 = scmp.eq.s32.totalorder %s19, 1
      %p121 = scmp.ne.s32.totalorder %s116, %s118
      %p122 = scmp.eq.s32.totalorder %s19, 0
      %p123 = por %p121, %p122
      %p124 = scmp.ne.s32.totalorder %s116, %s118
      %p125 = scmp.eq.s32.totalorder %s24, 1
      %p126 = por %p124, %p125
      %p127 = scmp.ne.s32.totalorder %s118, %s119
      %p128 = scmp.eq.s32.totalorder %s24, 0
      %p129 = por %p127, %p128
      %p130 = scmp.ne.s32.totalorder %s118, %s119
      %p131 = scmp.eq.s32.totalorder %s25, 1
      %p132 = por %p130, %p131
      %p134 = scmp.ne.s32.totalorder %s119, %s133
      %p135 = scmp.eq.s32.totalorder %s25, 0
      %p136 = por %p134, %p135
      %s138 = sadd.s32 %s137, 1
      %p141 = scmp.eq.s32.totalorder %s19, 1
      %p142 = scmp.ne.s32.totalorder %s137, %s139
      %p143 = scmp.eq.s32.totalorder %s19, 0
      %p144 = por %p142, %p143
      %p145 = scmp.ne.s32.totalorder %s137, %s139
      %p146 = scmp.eq.s32.totalorder %s24, 1
      %p147 = por %p145, %p146
      %p148 = scmp.ne.s32.totalorder %s139, %s140
      %p149 = scmp.eq.s32.totalorder %s24, 0
      %p150 = por %p148, %p149
      %p151 = scmp.ne.s32.totalorder %s139, %s140
      %p152 = scmp.eq.s32.totalorder %s25, 1
      %p153 = por %p151, %p152
      %p155 = scmp.ne.s32.totalorder %s140, %s154
      %p156 = scmp.eq.s32.totalorder %s25, 0
      %p157 = por %p155, %p156
      %s159 = sadd.s32 %s158, 1
      %p162 = scmp.eq.s32.totalorder %s19, 1
      %p163 = scmp.ne.s32.totalorder %s158, %s160
      %p164 = scmp.eq.s32.totalorder %s19, 0
      %p165 = por %p163, %p164
      %p166 = scmp.ne.s32.totalorder %s158, %s160
      %p167 = scmp.eq.s32.totalorder %s24, 1
      %p168 = por %p166, %p167
      %p169 = scmp.ne.s32.totalorder %s160, %s161
      %p170 = scmp.eq.s32.totalorder %s24, 0
      %p171 = por %p169, %p170
      %p172 = scmp.ne.s32.totalorder %s160, %s161
      %p173 = scmp.eq.s32.totalorder %s25, 1
      %p174 = por %p172, %p173
      %p176 = scmp.ne.s32.totalorder %s161, %s175
      %p177 = scmp.eq.s32.totalorder %s25, 0
      %p178 = por %p176, %p177
      %s180 = sadd.s32 %s179, 1
      %p183 = scmp.eq.s32.totalorder %s19, 1
      %p184 = scmp.ne.s32.totalorder %s179, %s181
      %p185 = scmp.eq.s32.totalorder %s19, 0
      %p186 = por %p184, %p185
      %p187 = scmp.ne.s32.totalorder %s179, %s181
      %p188 = scmp.eq.s32.totalorder %s24, 1
      %p189 = por %p187, %p188
      %p190 = scmp.ne.s32.totalorder %s181, %s182
      %p191 = scmp.eq.s32.totalorder %s24, 0
      %p192 = por %p190, %p191
      %p193 = scmp.ne.s32.totalorder %s181, %s182
      %p194 = scmp.eq.s32.totalorder %s25, 1
      %p195 = por %p193, %p194
      %p197 = scmp.ne.s32.totalorder %s182, %s196
      %p198 = scmp.eq.s32.totalorder %s25, 0
      %p199 = por %p197, %p198
      %s201 = sadd.s32 %s200, 1
      %p204 = scmp.eq.s32.totalorder %s19, 1
      %p205 = scmp.ne.s32.totalorder %s200, %s202
      %p206 = scmp.eq.s32.totalorder %s19, 0
      %p207 = por %p205, %p206
      %p208 = scmp.ne.s32.totalorder %s200, %s202
      %p209 = scmp.eq.s32.totalorder %s24, 1
      %p210 = por %p208, %p209
      %p211 = scmp.ne.s32.totalorder %s202, %s203
      %p212 = scmp.eq.s32.totalorder %s24, 0
      %p213 = por %p211, %p212
      %p214 = scmp.ne.s32.totalorder %s202, %s203
      %p215 = scmp.eq.s32.totalorder %s25, 1
      %p216 = por %p214, %p215
      %p218 = scmp.ne.s32.totalorder %s203, %s217
      %p219 = scmp.eq.s32.totalorder %s25, 0
      %p220 = por %p218, %p219
      %s222 = sadd.s32 %s221, 1
      %p225 = scmp.eq.s32.totalorder %s19, 1
      %p226 = scmp.ne.s32.totalorder %s221, %s223
      %p227 = scmp.eq.s32.totalorder %s19, 0
      %p228 = por %p226, %p227
      %p229 = scmp.ne.s32.totalorder %s221, %s223
      %p230 = scmp.eq.s32.totalorder %s24, 1
      %p231 = por %p229, %p230
      %p232 = scmp.ne.s32.totalorder %s223, %s224
      %p233 = scmp.eq.s32.totalorder %s24, 0
      %p234 = por %p232, %p233
      %p235 = scmp.ne.s32.totalorder %s223, %s224
      %p236 = scmp.eq.s32.totalorder %s25, 1
      %p237 = por %p235, %p236
      %p239 = scmp.ne.s32.totalorder %s224, %s238
      %p240 = scmp.eq.s32.totalorder %s25, 0
      %p241 = por %p239, %p240
      %s242 = ssub.s32 %s19, %s26
      %p243 = scmp.eq.s32.totalorder %s242, 0
      %s245 = sadd.s32 %s244, 1
      %s246 = scalar_select %p243, %s244, %s245
      %p249 = pneg %p243
      %p250 = scmp.eq.s32.totalorder %s19, 1
      %p251 = por %p249, %p250
      %p252 = scmp.ne.s32.totalorder %s244, %s247
      %p253 = scmp.eq.s32.totalorder %s19, 0
      %p254 = por %p252, %p253
      %p255 = scmp.ne.s32.totalorder %s244, %s247
      %p256 = scmp.eq.s32.totalorder %s24, 1
      %p257 = por %p255, %p256
      %p258 = scmp.ne.s32.totalorder %s247, %s248
      %p259 = scmp.eq.s32.totalorder %s24, 0
      %p260 = por %p258, %p259
      %p261 = scmp.ne.s32.totalorder %s247, %s248
      %p262 = scmp.eq.s32.totalorder %s25, 1
      %p263 = por %p261, %p262
      %p265 = scmp.ne.s32.totalorder %s248, %s264
      %p266 = scmp.eq.s32.totalorder %s25, 0
      %p267 = por %p265, %p266
      %p268 = scmp.le.s32.totalorder 1, %s19
      %p269 = scmp.lt.s32.totalorder %s19, 3
      %p270 = pnand %p268, %p269
      %p271 = pneg %p270
      // Predicated region
      $region9: #{tpu_custom_call.1} parent=5 // pred_check
        _
      $region10: #{tpu_custom_call.1} parent=5 // pred_check_branch
        %273 = sbr.rel (%p270) target = $region12
      $region11: #{tpu_custom_call.1} parent=5 // pred_region
        %s274 = ssub.s32 %s19, 1
        // Predicated region
        $region13: #{tpu_custom_call.1} parent=11 // pred_check
          %p275 = pneg %p66
        $region14: #{tpu_custom_call.1} parent=11 // pred_check_branch
          %277 = sbr.rel (%p275) target = $region16
        $region15: #{tpu_custom_call.1} parent=11 // pred_region
          _
        $region16: #{tpu_custom_call.1} parent=11 // pred_fallthru
          _
        // Predicated region
        $region17: #{tpu_custom_call.1} parent=11 // pred_check
          %p278 = pneg %p87
        $region18: #{tpu_custom_call.1} parent=11 // pred_check_branch
          %280 = sbr.rel (%p278) target = $region20
        $region19: #{tpu_custom_call.1} parent=11 // pred_region
          _
        $region20: #{tpu_custom_call.1} parent=11 // pred_fallthru
          _
        // Predicated region
        $region21: #{tpu_custom_call.1} parent=11 // pred_check
          %p281 = pneg %p108
        $region22: #{tpu_custom_call.1} parent=11 // pred_check_branch
          %283 = sbr.rel (%p281) target = $region24
        $region23: #{tpu_custom_call.1} parent=11 // pred_region
          _
        $region24: #{tpu_custom_call.1} parent=11 // pred_fallthru
          _
        // Predicated region
        $region25: #{tpu_custom_call.1} parent=11 // pred_check
          %p284 = pneg %p129
        $region26: #{tpu_custom_call.1} parent=11 // pred_check_branch
          %286 = sbr.rel (%p284) target = $region28
        $region27: #{tpu_custom_call.1} parent=11 // pred_region
          _
        $region28: #{tpu_custom_call.1} parent=11 // pred_fallthru
          _
        // Predicated region
        $region29: #{tpu_custom_call.1} parent=11 // pred_check
          %p287 = pneg %p150
        $region30: #{tpu_custom_call.1} parent=11 // pred_check_branch
          %289 = sbr.rel (%p287) target = $region32
        $region31: #{tpu_custom_call.1} parent=11 // pred_region
          _
        $region32: #{tpu_custom_call.1} parent=11 // pred_fallthru
          _
        // Predicated region
        $region33: #{tpu_custom_call.1} parent=11 // pred_check
          %p290 = pneg %p171
        $region34: #{tpu_custom_call.1} parent=11 // pred_check_branch
          %292 = sbr.rel (%p290) target = $region36
        $region35: #{tpu_custom_call.1} parent=11 // pred_region
          _
        $region36: #{tpu_custom_call.1} parent=11 // pred_fallthru
          _
        // Predicated region
        $region37: #{tpu_custom_call.1} parent=11 // pred_check
          %p293 = pneg %p192
        $region38: #{tpu_custom_call.1} parent=11 // pred_check_branch
          %295 = sbr.rel (%p293) target = $region40
        $region39: #{tpu_custom_call.1} parent=11 // pred_region
          _
        $region40: #{tpu_custom_call.1} parent=11 // pred_fallthru
          _
        // Predicated region
        $region41: #{tpu_custom_call.1} parent=11 // pred_check
          %p296 = pneg %p213
        $region42: #{tpu_custom_call.1} parent=11 // pred_check_branch
          %298 = sbr.rel (%p296) target = $region44
        $region43: #{tpu_custom_call.1} parent=11 // pred_region
          _
        $region44: #{tpu_custom_call.1} parent=11 // pred_fallthru
          _
        // Predicated region
        $region45: #{tpu_custom_call.1} parent=11 // pred_check
          %p299 = pneg %p234
        $region46: #{tpu_custom_call.1} parent=11 // pred_check_branch
          %301 = sbr.rel (%p299) target = $region48
        $region47: #{tpu_custom_call.1} parent=11 // pred_region
          _
        $region48: #{tpu_custom_call.1} parent=11 // pred_fallthru
          _
      $region12: #{tpu_custom_call.1} parent=5 // pred_fallthru
        _
      %p302 = scmp.lt.s32.totalorder %s19, 2
      // Predicated region
      $region49: #{tpu_custom_call.1} parent=5 // pred_check
        %p303 = pneg %p302
      $region50: #{tpu_custom_call.1} parent=5 // pred_check_branch
        %305 = sbr.rel (%p303) target = $region52
      $region51: #{tpu_custom_call.1} parent=5 // pred_region
        // Predicated region
        $region53: #{tpu_custom_call.1} parent=51 // pred_check
          %p306 = pneg %p39
        $region54: #{tpu_custom_call.1} parent=51 // pred_check_branch
          %308 = sbr.rel (%p306) target = $region56
        $region55: #{tpu_custom_call.1} parent=51 // pred_region
          %p309 = scmp.lt.s32.totalorder %s19, 1
          %s310 = scalar_select %p309, %s19, 1
          %s311 = smul.addr %s310, 4
          %s312 = smul.addr %s311, 4
          %s313 = scalar_lea.vmem %s0, %s312
        $region56: #{tpu_custom_call.1} parent=51 // pred_fallthru
          _
      $region52: #{tpu_custom_call.1} parent=5 // pred_fallthru
        _
      %p314 = scmp.le.s32.totalorder 1, %s19
      %p315 = scmp.lt.s32.totalorder %s19, 3
      %p316 = pnand %p314, %p315
      %p317 = pneg %p316
      // Predicated region
      $region57: #{tpu_custom_call.1} parent=5 // pred_check
        _
      $region58: #{tpu_custom_call.1} parent=5 // pred_check_branch
        %319 = sbr.rel (%p316) target = $region60
      $region59: #{tpu_custom_call.1} parent=5 // pred_region
        %s320 = ssub.s32 %s19, 1
        %p321 = scmp.lt.s32.totalorder %s24, 1
        %s322 = scalar_select %p321, %s24, 1
        %s323 = smul.addr %s322, 4
        %s324 = smul.addr %s323, 4
        %s325 = scalar_lea.vmem %s0, %s324
        %p326 = pneg %p45
        %p327 = pneg %p42
        %p328 = pneg %p66
        %p329 = pneg %p63
        %p330 = pneg %p87
        %p331 = pneg %p84
        %p332 = pneg %p108
        %p333 = pneg %p105
        %p334 = pneg %p129
        %p335 = pneg %p126
        %p336 = pneg %p150
        %p337 = pneg %p147
        %p338 = pneg %p171
        %p339 = pneg %p168
        %p340 = pneg %p192
        %p341 = pneg %p189
        %p342 = pneg %p213
        %p343 = pneg %p210
        %p344 = pneg %p234
        %p345 = pneg %p231
        %p346 = pneg %p260
        %p347 = pneg %p257
        %s348 = sand.u32 %s247, 1
        %s349 = scalar_lea.sflag [#allocation3], %s348
        %s350 = sand.u32 %s247, 1
        %s351 = smul.addr %s350, 16
        %s352 = scalar_lea.vmem [#allocation2], %s351
        %p353 = scmp.lt.s32.totalorder %s24, 1
        %s354 = scalar_select %p353, %s24, 1
        %s355 = smul.addr %s354, 4
        %s356 = smul.addr %s355, 4
        %s357 = scalar_lea.vmem %s0, %s356
        %v359 = vld [vmem:[%s357] sm:$0xff]
        %v360 = vld [vmem:[%s357 + $0x8] sm:$0xff]
        %v361 = vld [vmem:[%s1] sm:$0xf]
        %v362 = vld [vmem:[%s1 + $0x4] sm:$0xf]
        %v363 = vld [vmem:[%s1 + $0x8] sm:$0xf]
        %v364 = vld [vmem:[%s1 + $0xc] sm:$0xf]
        %v365 = vld [vmem:[%s1 + $0x10] sm:$0xf]
        %v366 = vld [vmem:[%s1 + $0x14] sm:$0xf]
        %v367 = vld [vmem:[%s1 + $0x18] sm:$0xf]
        %v368 = vld [vmem:[%s1 + $0x1c] sm:$0xf]
        %v369 = vld [vmem:[%s1 + $0x20] sm:$0xf]
        %v370 = vld [vmem:[%s1 + $0x24] sm:$0xf]
        %v371 = vld [vmem:[%s1 + $0x28] sm:$0xf]
        %v372 = vld [vmem:[%s1 + $0x2c] sm:$0xf]
        %v373 = vld [vmem:[%s1 + $0x30] sm:$0xf]
        %v374 = vld [vmem:[%s1 + $0x34] sm:$0xf]
        %v375 = vld [vmem:[%s1 + $0x38] sm:$0xf]
        %v376 = vld [vmem:[%s1 + $0x3c] sm:$0xf]
        %v377 = vld [vmem:[%s1 + $0x40] sm:$0xf]
        %v378 = vld [vmem:[%s1 + $0x44] sm:$0xf]
        %v379 = vld [vmem:[%s1 + $0x48] sm:$0xf]
        %v380 = vld [vmem:[%s1 + $0x4c] sm:$0xf]
        %v381 = vld [vmem:[%s1 + $0x50] sm:$0xf]
        %v382 = vld [vmem:[%s1 + $0x54] sm:$0xf]
        %v383 = vld [vmem:[%s1 + $0x58] sm:$0xf]
        %v384 = vld [vmem:[%s1 + $0x5c] sm:$0xf]
        %v385 = vld [vmem:[%s1 + $0x60] sm:$0xf]
        %v386 = vld [vmem:[%s1 + $0x64] sm:$0xf]
        %v387 = vld [vmem:[%s1 + $0x68] sm:$0xf]
        %v388 = vld [vmem:[%s1 + $0x6c] sm:$0xf]
        %v389 = vld [vmem:[%s1 + $0x70] sm:$0xf]
        %v390 = vld [vmem:[%s1 + $0x74] sm:$0xf]
        %v391 = vld [vmem:[%s1 + $0x78] sm:$0xf]
        %v392 = vld [vmem:[%s1 + $0x7c] sm:$0xf]
        %v395 = vunpack.c.l.b16 %v359
        %v396 = vunpack.c.h.b16 %v359
        %v397 = vunpack.c.l.b16 %v360
        %v398 = vunpack.c.h.b16 %v360
        %v399 = vpack.c.b16 %v397, %v395
        %v400 = vpack.c.b16 %v398, %v396
        %v435 = vunpack.c.l.b16 %v361
        %v436 = vunpack.c.l.b16 %v362
        %v437 = vunpack.c.l.b16 %v363
        %v438 = vunpack.c.l.b16 %v364
        %v439 = vunpack.c.l.b16 %v365
        %v440 = vunpack.c.l.b16 %v366
        %v441 = vunpack.c.l.b16 %v367
        %v442 = vunpack.c.l.b16 %v368
        %v443 = vunpack.c.l.b16 %v369
        %v444 = vunpack.c.l.b16 %v370
        %v445 = vunpack.c.l.b16 %v371
        %v446 = vunpack.c.l.b16 %v372
        %v447 = vunpack.c.l.b16 %v373
        %v448 = vunpack.c.l.b16 %v374
        %v449 = vunpack.c.l.b16 %v375
        %v450 = vunpack.c.l.b16 %v376
        %v451 = vunpack.c.l.b16 %v377
        %v452 = vunpack.c.l.b16 %v378
        %v453 = vunpack.c.l.b16 %v379
        %v454 = vunpack.c.l.b16 %v380
        %v455 = vunpack.c.l.b16 %v381
        %v456 = vunpack.c.l.b16 %v382
        %v457 = vunpack.c.l.b16 %v383
        %v458 = vunpack.c.l.b16 %v384
        %v459 = vunpack.c.l.b16 %v385
        %v460 = vunpack.c.l.b16 %v386
        %v461 = vunpack.c.l.b16 %v387
        %v462 = vunpack.c.l.b16 %v388
        %v463 = vunpack.c.l.b16 %v389
        %v464 = vunpack.c.l.b16 %v390
        %v465 = vunpack.c.l.b16 %v391
        %v466 = vunpack.c.l.b16 %v392
        %v467 = vpack.c.b16 %v436, %v435
        %v468 = vpack.c.b16 %v438, %v437
        %v469 = vpack.c.b16 %v440, %v439
        %v470 = vpack.c.b16 %v442, %v441
        %v471 = vpack.c.b16 %v444, %v443
        %v472 = vpack.c.b16 %v446, %v445
        %v473 = vpack.c.b16 %v448, %v447
        %v474 = vpack.c.b16 %v450, %v449
        %v475 = vpack.c.b16 %v452, %v451
        %v476 = vpack.c.b16 %v454, %v453
        %v477 = vpack.c.b16 %v456, %v455
        %v478 = vpack.c.b16 %v458, %v457
        %v479 = vpack.c.b16 %v460, %v459
        %v480 = vpack.c.b16 %v462, %v461
        %v481 = vpack.c.b16 %v464, %v463
        %v482 = vpack.c.b16 %v466, %v465
        %499 = vmatprep.subr.bf16.mxu0 0
        %500 = vmatpush1.bf16.msra.mxu0 %v467
        %501 = vmatprep.subr.bf16.mxu0 0
        %502 = vmatpush1.bf16.msra.mxu0 %v468
        %503 = vmatprep.subr.bf16.mxu0 0
        %504 = vmatpush1.bf16.msra.mxu0 %v469
        %505 = vmatprep.subr.bf16.mxu0 0
        %506 = vmatpush1.bf16.msra.mxu0 %v470
        %507 = vmatprep.subr.bf16.mxu0 0
        %508 = vmatpush1.bf16.msra.mxu0 %v471
        %509 = vmatprep.subr.bf16.mxu0 0
        %510 = vmatpush1.bf16.msra.mxu0 %v472
        %511 = vmatprep.subr.bf16.mxu0 0
        %512 = vmatpush1.bf16.msra.mxu0 %v473
        %513 = vmatprep.subr.bf16.mxu0 0
        %514 = vmatpush1.bf16.msra.mxu0 %v474
        %515 = vmatprep.subr.bf16.mxu0 0
        %516 = vmatpush1.bf16.msra.mxu0 %v475
        %517 = vmatprep.subr.bf16.mxu0 0
        %518 = vmatpush1.bf16.msra.mxu0 %v476
        %519 = vmatprep.subr.bf16.mxu0 0
        %520 = vmatpush1.bf16.msra.mxu0 %v477
        %521 = vmatprep.subr.bf16.mxu0 0
        %522 = vmatpush1.bf16.msra.mxu0 %v478
        %523 = vmatprep.subr.bf16.mxu0 0
        %524 = vmatpush1.bf16.msra.mxu0 %v479
        %525 = vmatprep.subr.bf16.mxu0 0
        %526 = vmatpush1.bf16.msra.mxu0 %v480
        %527 = vmatprep.subr.bf16.mxu0 0
        %528 = vmatpush1.bf16.msra.mxu0 %v481
        %529 = vmatprep.subr.bf16.mxu0 0
        %530 = vmatpush1.bf16.msra.mxu0 %v482
        %531 = vmatprep.mubr.bf16.mxu0 %v400
        %532 = vmatmul.mubr.bf16.gmra.mrb[0].mxu0 %v399
        %v533 = vpop.f32.mrb[0].mxu0
        %v534 = vadd.f32 0.0, %v533
        %v535 = vpop.f32.mrb[0].mxu0
        %v536 = vpop.f32.mrb[0].mxu0
        %v537 = vadd.f32 0.0, %v536
        %v538 = vpop.f32.mrb[0].mxu0
        %539 = vdwg.mxu0
        %v540 = vld [vmem:[%s2] sm:$0x1]
        %v542 = vlaneseq
        %v543 = vshrl.u32 %v542, 7
        %v544 = vsub.s32 0, %v543
        %v545 = vrot.slane %v540, %v544
        %v547 = vmul.f32 %v534, %v545
        %v548 = vmul.f32 %v537, %v545
        %v549 = vld [vmem:[%s3] sm:$0x1]
        %v551 = vlaneseq
        %v552 = vshrl.u32 %v551, 7
        %v553 = vsub.s32 0, %v552
        %v554 = vrot.slane %v549, %v553
        %v556 = vadd.f32 %v547, %v554
        %v557 = vadd.f32 %v548, %v554
        %v558 = vmax.f32 %v556, 0.0
        %v559 = vmax.f32 %v557, 0.0
        %v560 = vpack.c.bf16 %v559, %v558
        %v562 = vshrl.u32 %v560, 16
        %v564 = vrot.slane %v562, 7
        %v565 = vshll.u32 %v560, 16
        %v567 = vor.u32 %v564, %v565
        %vm569 = vcmask 1040384
        %vm570 = vsmask.f32 256
        %vm571 = vmand %vm569, %vm570
        %v572 = vsel %vm571, 0, %v567
        %v573 = vrot.slane %v565, 1
        %v574 = vor.u32 %v562, %v573
        %vm576 = vcmask 1047552
        %vm577 = vsmask.f32 7424
        %vm578 = vmand %vm576, %vm577
        %v579 = vsel %vm578, %v574, 0
        %581 = vrot.lane.b32.xlu0 %v560, 64
        %v582 = vpop.permute.xlu0 %581
        %vm583 = vcmask 523264
        %v586 = vsel %vm583, %v572, %v582
        %v588 = vld [vmem:[%s4] sm:$0xf]
        %v589 = vld [vmem:[%s4 + $0x4] sm:$0xf]
        %v590 = vld [vmem:[%s4 + $0x8] sm:$0xf]
        %v591 = vld [vmem:[%s4 + $0xc] sm:$0xf]
        %v592 = vld [vmem:[%s4 + $0x10] sm:$0xf]
        %v593 = vld [vmem:[%s4 + $0x14] sm:$0xf]
        %v594 = vld [vmem:[%s4 + $0x18] sm:$0xf]
        %v595 = vld [vmem:[%s4 + $0x1c] sm:$0xf]
        %v596 = vld [vmem:[%s4 + $0x20] sm:$0xf]
        %v597 = vld [vmem:[%s4 + $0x24] sm:$0xf]
        %v598 = vld [vmem:[%s4 + $0x28] sm:$0xf]
        %v599 = vld [vmem:[%s4 + $0x2c] sm:$0xf]
        %v600 = vld [vmem:[%s4 + $0x30] sm:$0xf]
        %v601 = vld [vmem:[%s4 + $0x34] sm:$0xf]
        %v602 = vld [vmem:[%s4 + $0x38] sm:$0xf]
        %v603 = vld [vmem:[%s4 + $0x3c] sm:$0xf]
        %v604 = vld [vmem:[%s4 + $0x40] sm:$0xf]
        %v605 = vld [vmem:[%s4 + $0x44] sm:$0xf]
        %v606 = vld [vmem:[%s4 + $0x48] sm:$0xf]
        %v607 = vld [vmem:[%s4 + $0x4c] sm:$0xf]
        %v608 = vld [vmem:[%s4 + $0x50] sm:$0xf]
        %v609 = vld [vmem:[%s4 + $0x54] sm:$0xf]
        %v610 = vld [vmem:[%s4 + $0x58] sm:$0xf]
        %v611 = vld [vmem:[%s4 + $0x5c] sm:$0xf]
        %v636 = vunpack.c.l.b16 %v588
        %v637 = vunpack.c.l.b16 %v589
        %v638 = vunpack.c.l.b16 %v590
        %v639 = vunpack.c.l.b16 %v591
        %v640 = vunpack.c.l.b16 %v592
        %v641 = vunpack.c.l.b16 %v593
        %v642 = vunpack.c.l.b16 %v594
        %v643 = vunpack.c.l.b16 %v595
        %v644 = vunpack.c.l.b16 %v596
        %v645 = vunpack.c.l.b16 %v597
        %v646 = vunpack.c.l.b16 %v598
        %v647 = vunpack.c.l.b16 %v599
        %v648 = vunpack.c.l.b16 %v600
        %v649 = vunpack.c.l.b16 %v601
        %v650 = vunpack.c.l.b16 %v602
        %v651 = vunpack.c.l.b16 %v603
        %v652 = vunpack.c.l.b16 %v604
        %v653 = vunpack.c.l.b16 %v605
        %v654 = vunpack.c.l.b16 %v606
        %v655 = vunpack.c.l.b16 %v607
        %v656 = vunpack.c.l.b16 %v608
        %v657 = vunpack.c.l.b16 %v609
        %v658 = vunpack.c.l.b16 %v610
        %v659 = vunpack.c.l.b16 %v611
        %v660 = vpack.c.b16 %v637, %v636
        %v661 = vpack.c.b16 %v639, %v638
        %v662 = vpack.c.b16 %v641, %v640
        %v663 = vpack.c.b16 %v643, %v642
        %v664 = vpack.c.b16 %v645, %v644
        %v665 = vpack.c.b16 %v647, %v646
        %v666 = vpack.c.b16 %v649, %v648
        %v667 = vpack.c.b16 %v651, %v650
        %v668 = vpack.c.b16 %v653, %v652
        %v669 = vpack.c.b16 %v655, %v654
        %v670 = vpack.c.b16 %v657, %v656
        %v671 = vpack.c.b16 %v659, %v658
        %v685 = vsel %vm583, %v579, 0
        %687 = vmatprep.subr.bf16.mxu0 0
        %688 = vmatpush1.bf16.msra.mxu0 %v660
        %689 = vmatprep.subr.bf16.mxu0 0
        %690 = vmatpush1.bf16.msra.mxu0 %v661
        %691 = vmatprep.subr.bf16.mxu0 0
        %692 = vmatpush1.bf16.msra.mxu0 %v662
        %693 = vmatprep.subr.bf16.mxu0 0
        %694 = vmatpush1.bf16.msra.mxu0 %v663
        %695 = vmatprep.subr.bf16.mxu0 0
        %696 = vmatpush1.bf16.msra.mxu0 %v664
        %697 = vmatprep.subr.bf16.mxu0 0
        %698 = vmatpush1.bf16.msra.mxu0 %v665
        %699 = vmatprep.subr.bf16.mxu0 0
        %700 = vmatpush1.bf16.msra.mxu0 %v666
        %701 = vmatprep.subr.bf16.mxu0 0
        %702 = vmatpush1.bf16.msra.mxu0 %v667
        %703 = vmatprep.subr.bf16.mxu0 0
        %704 = vmatpush1.bf16.msra.mxu0 %v668
        %705 = vmatprep.subr.bf16.mxu0 0
        %706 = vmatpush1.bf16.msra.mxu0 %v669
        %707 = vmatprep.subr.bf16.mxu0 0
        %708 = vmatpush1.bf16.msra.mxu0 %v670
        %709 = vmatprep.subr.bf16.mxu0 0
        %710 = vmatpush1.bf16.msra.mxu0 %v671
        %711 = vmatprep.subr.bf16.mxu0 0
        %712 = vmatpush1.bf16.msra.mxu0 0
        %713 = vmatprep.subr.bf16.mxu0 0
        %714 = vmatpush1.bf16.msra.mxu0 0
        %715 = vmatprep.subr.bf16.mxu0 0
        %716 = vmatpush1.bf16.msra.mxu0 0
        %717 = vmatprep.subr.bf16.mxu0 0
        %718 = vmatpush1.bf16.msra.mxu0 0
        %719 = vmatprep.mubr.bf16.mxu0 %v685
        %720 = vmatmul.mubr.bf16.gmra.mrb[0].mxu0 %v586
        %v721 = vpop.f32.mrb[0].mxu0
        %v722 = vadd.f32 0.0, %v721
        %v723 = vpop.f32.mrb[0].mxu0
        %v724 = vpop.f32.mrb[0].mxu0
        %v725 = vadd.f32 0.0, %v724
        %v726 = vpop.f32.mrb[0].mxu0
        %727 = vdwg.mxu0
        %v728 = vld [vmem:[%s5] sm:$0x1]
        %v730 = vlaneseq
        %v731 = vshrl.u32 %v730, 7
        %v732 = vsub.s32 0, %v731
        %v733 = vrot.slane %v728, %v732
        %v735 = vmul.f32 %v722, %v733
        %v736 = vmul.f32 %v725, %v733
        %v737 = vld [vmem:[%s6] sm:$0x1]
        %v739 = vlaneseq
        %v740 = vshrl.u32 %v739, 7
        %v741 = vsub.s32 0, %v740
        %v742 = vrot.slane %v737, %v741
        %v744 = vadd.f32 %v735, %v742
        %v745 = vadd.f32 %v736, %v742
        %v746 = vmax.f32 %v744, 0.0
        %v747 = vmax.f32 %v745, 0.0
        %v748 = vpack.c.bf16 %v747, %v746
        %v749 = vld [vmem:[%s7] sm:$0xff]
        %v750 = vld [vmem:[%s7 + $0x8] sm:$0xff]
        %v751 = vld [vmem:[%s7 + $0x10] sm:$0xff]
        %v752 = vld [vmem:[%s7 + $0x18] sm:$0xff]
        %v753 = vld [vmem:[%s7 + $0x20] sm:$0xff]
        %v754 = vld [vmem:[%s7 + $0x28] sm:$0xff]
        %v755 = vld [vmem:[%s7 + $0x30] sm:$0xff]
        %v756 = vld [vmem:[%s7 + $0x38] sm:$0xff]
        %v765 = vunpack.c.l.b16 %v749
        %v766 = vunpack.c.h.b16 %v749
        %v767 = vunpack.c.l.b16 %v750
        %v768 = vunpack.c.h.b16 %v750
        %v769 = vunpack.c.l.b16 %v751
        %v770 = vunpack.c.h.b16 %v751
        %v771 = vunpack.c.l.b16 %v752
        %v772 = vunpack.c.h.b16 %v752
        %v773 = vunpack.c.l.b16 %v753
        %v774 = vunpack.c.h.b16 %v753
        %v775 = vunpack.c.l.b16 %v754
        %v776 = vunpack.c.h.b16 %v754
        %v777 = vunpack.c.l.b16 %v755
        %v778 = vunpack.c.h.b16 %v755
        %v779 = vunpack.c.l.b16 %v756
        %v780 = vunpack.c.h.b16 %v756
        %v781 = vpack.c.b16 %v767, %v765
        %v782 = vpack.c.b16 %v768, %v766
        %v783 = vpack.c.b16 %v771, %v769
        %v784 = vpack.c.b16 %v772, %v770
        %v785 = vpack.c.b16 %v775, %v773
        %v786 = vpack.c.b16 %v776, %v774
        %v787 = vpack.c.b16 %v779, %v777
        %v788 = vpack.c.b16 %v780, %v778
        %v798 = vsel %vm583, %v748, 0
        %800 = vmatprep.subr.bf16.mxu0 %v782
        %801 = vmatpush1.bf16.msra.mxu0 %v781
        %802 = vmatprep.subr.bf16.mxu0 %v784
        %803 = vmatpush1.bf16.msra.mxu0 %v783
        %804 = vmatprep.subr.bf16.mxu0 %v786
        %805 = vmatpush1.bf16.msra.mxu0 %v785
        %806 = vmatprep.subr.bf16.mxu0 %v788
        %807 = vmatpush1.bf16.msra.mxu0 %v787
        %808 = vmatprep.subr.bf16.mxu0 0
        %809 = vmatpush1.bf16.msra.mxu0 0
        %810 = vmatprep.subr.bf16.mxu0 0
        %811 = vmatpush1.bf16.msra.mxu0 0
        %812 = vmatprep.subr.bf16.mxu0 0
        %813 = vmatpush1.bf16.msra.mxu0 0
        %814 = vmatprep.subr.bf16.mxu0 0
        %815 = vmatpush1.bf16.msra.mxu0 0
        %816 = vmatprep.subr.bf16.mxu0 0
        %817 = vmatpush1.bf16.msra.mxu0 0
        %818 = vmatprep.subr.bf16.mxu0 0
        %819 = vmatpush1.bf16.msra.mxu0 0
        %820 = vmatprep.subr.bf16.mxu0 0
        %821 = vmatpush1.bf16.msra.mxu0 0
        %822 = vmatprep.subr.bf16.mxu0 0
        %823 = vmatpush1.bf16.msra.mxu0 0
        %824 = vmatprep.subr.bf16.mxu0 0
        %825 = vmatpush1.bf16.msra.mxu0 0
        %826 = vmatprep.subr.bf16.mxu0 0
        %827 = vmatpush1.bf16.msra.mxu0 0
        %828 = vmatprep.subr.bf16.mxu0 0
        %829 = vmatpush1.bf16.msra.mxu0 0
        %830 = vmatprep.subr.bf16.mxu0 0
        %831 = vmatpush1.bf16.msra.mxu0 0
        %832 = vmatprep.mubr.bf16.mxu0 0
        %833 = vmatmul.mubr.bf16.gmra.mrb[0].mxu0 %v798
        %v834 = vpop.f32.mrb[0].mxu0
        %v835 = vadd.f32 0.0, %v834
        %v836 = vpop.f32.mrb[0].mxu0
        %v837 = vadd.f32 0.0, %v836
        %v838 = vpop.f32.mrb[0].mxu0
        %v839 = vadd.f32 0.0, %v838
        %v840 = vpop.f32.mrb[0].mxu0
        %v841 = vadd.f32 0.0, %v840
        %842 = vdwg.mxu0
        %v843 = vld [vmem:[%s8] sm:$0x3]
        %v845 = vlaneseq
        %v846 = vshrl.u32 %v845, 7
        %v847 = vsub.s32 0, %v846
        %v848 = vrot.slane %v843, %v847
        %v849 = vlaneseq
        %v850 = vshrl.u32 %v849, 7
        %v851 = vsub.s32 1, %v850
        %v852 = vrot.slane %v843, %v851
        %v855 = vmul.f32 %v835, %v848
        %v856 = vmul.f32 %v837, %v852
        %v857 = vmul.f32 %v839, %v848
        %v858 = vmul.f32 %v841, %v852
        %v859 = vld [vmem:[%s9] sm:$0x3]
        %v861 = vlaneseq
        %v862 = vshrl.u32 %v861, 7
        %v863 = vsub.s32 0, %v862
        %v864 = vrot.slane %v859, %v863
        %v865 = vlaneseq
        %v866 = vshrl.u32 %v865, 7
        %v867 = vsub.s32 1, %v866
        %v868 = vrot.slane %v859, %v867
        %v871 = vadd.f32 %v855, %v864
        %v872 = vadd.f32 %v856, %v868
        %v873 = vadd.f32 %v857, %v864
        %v874 = vadd.f32 %v858, %v868
        %v875 = vunpack.c.l.bf16 %v359
        %v876 = vunpack.c.h.bf16 %v359
        %v877 = vunpack.c.l.bf16 %v360
        %v878 = vunpack.c.h.bf16 %v360
        %v879 = vadd.f32 %v871, %v875
        %v880 = vadd.f32 %v872, %v876
        %v881 = vadd.f32 %v873, %v877
        %v882 = vadd.f32 %v874, %v878
        %v883 = vmax.f32 %v879, 0.0
        %v884 = vmax.f32 %v880, 0.0
        %v885 = vmax.f32 %v881, 0.0
        %v886 = vmax.f32 %v882, 0.0
        %v887 = vpack.c.bf16 %v885, %v883
        %v888 = vpack.c.bf16 %v886, %v884
        %v891 = vunpack.c.l.b16 %v887
        %v892 = vunpack.c.l.b16 %v888
        %v893 = vunpack.c.h.b16 %v887
        %v894 = vunpack.c.h.b16 %v888
        %v895 = vpack.c.b16 %v892, %v891
        %v896 = vpack.c.b16 %v894, %v893
        %899 = vst [vmem:[%s352] sm:$0xff] %v895
        %900 = vst [vmem:[%s352 + $0x8] sm:$0xff] %v896
        %s901 = sand.u32 %s247, 1
        %s902 = scalar_lea.sflag [#allocation3], %s901
        %s903 = sand.u32 %s247, 1
        %s904 = smul.addr %s903, 16
        %s905 = scalar_lea.vmem [#allocation2], %s904
        // Predicated region
        $region61: #{tpu_custom_call.1} parent=59 // pred_check
          %p906 = pneg %p257
        $region62: #{tpu_custom_call.1} parent=59 // pred_check_branch
          %908 = sbr.rel (%p906) target = $region64
        $region63: #{tpu_custom_call.1} parent=59 // pred_region
          %s910 = ssub.s32 256, 256
          %911 = vsyncadd %s902, %s910
          %s912 = smul.addr %s24, 4
          %s913 = smul.addr %s912, 64
          %s914 = scalar_lea.hbm %s10, %s913
          %s915 = sshll.u32 %s905, 4
          %s916 = int_to_ptr.vmem [resolvable:$true] %s915
          %921 = dma.vmem_to_hbm [thread:$0]  %s916, 256, %s914, %s902, 128, 128, 8
        $region64: #{tpu_custom_call.1} parent=59 // pred_fallthru
          _
      $region60: #{tpu_custom_call.1} parent=5 // pred_fallthru
        _
      %p922 = scmp.le.s32.totalorder 2, %s19
      // Predicated region
      $region65: #{tpu_custom_call.1} parent=5 // pred_check
        %p923 = pneg %p922
      $region66: #{tpu_custom_call.1} parent=5 // pred_check_branch
        %925 = sbr.rel (%p923) target = $region68
      $region67: #{tpu_custom_call.1} parent=5 // pred_region
        %s926 = ssub.s32 %s19, 2
        // Predicated region
        $region69: #{tpu_custom_call.1} parent=67 // pred_check
          %p927 = pneg %p263
        $region70: #{tpu_custom_call.1} parent=67 // pred_check_branch
          %929 = sbr.rel (%p927) target = $region72
        $region71: #{tpu_custom_call.1} parent=67 // pred_region
          %s930 = sand.u32 %s248, 1
          %s931 = scalar_lea.sflag [#allocation3], %s930
          %s932 = sand.u32 %s248, 1
          %s933 = smul.addr %s932, 16
          %s934 = scalar_lea.vmem [#allocation2], %s933
          %935 = dma.done %s931, 256
        $region72: #{tpu_custom_call.1} parent=67 // pred_fallthru
          _
      $region68: #{tpu_custom_call.1} parent=5 // pred_fallthru
        _
    $region6: #{tpu_custom_call.1} parent=1 // loop_footer
      %s23 = sadd.s32 1, %s19
    $region7: #{tpu_custom_call.1} parent=1 // loop_footer_branch
      %18 = sbr.rel target = $region3
    $region8: #{tpu_custom_call.1} parent=1 // loop_exit
      _
    %936 = vsyncpa [#allocation3], 1
    %s937 = scalar_lea.sflag [#allocation3], 1
    %938 = vsyncpa %s937, 1

</llo_original>
